<compile_context>
chip_gen: v5e
topology: v5e:2x2
jax: 0.10.0
libtpu: 0.0.40
codegen_flags: <defaults>
</compile_context>

<pallas_src>
import jax
import jax.numpy as jnp
from jax.experimental import pallas as pl
from jax.experimental.pallas import tpu as pltpu

_LANE = 128      # lane width (last-dim granularity for f32)
_SUBLANE = 8     # sublane granularity for f32


def _round_up(x, m):
    return ((x + m - 1) // m) * m


def _vmem_capacity_bytes():
    """Generation-aware VMEM capacity (per TensorCore). Conservative fallback: 64 MiB (v7x)."""
    try:
        cap = int(pltpu.get_tpu_info().vmem_capacity_bytes)
        if cap > 0:
            return cap
    except Exception:
        pass
    return 64 * 1024 * 1024


def _choose_batch_tiling(batch):
    """Pick (tb, B_pad): pad batch to a multiple of 8 first, then choose the largest
    tile with <=12.5% extra padding; keep >=2 grid steps so v7x megacore can shard."""
    b8 = _round_up(max(batch, 1), _SUBLANE)
    tb, b_pad = _SUBLANE, b8
    for cand in (512, 256, 128, 64, 32, 16, 8):
        padded = _round_up(b8, cand)
        if (padded - b8) * 8 <= b8:          # accept at most 12.5% batch padding
            tb, b_pad = cand, padded
            break
    while tb > _SUBLANE and b_pad // tb < 2:  # v7x: >=2 parallel grid steps for 2 TCs
        tb //= 2
    return tb, b_pad


def _weight_specs(shapes, single_buffer):
    """Constant-index-map specs for resident weights/biases; Buffered(1) = no double buffer."""
    if single_buffer:
        return [pl.BlockSpec(s, lambda i: (0, 0), pipeline_mode=pl.Buffered(1))
                for s in shapes]
    return [pl.BlockSpec(s, lambda i: (0, 0)) for s in shapes]


def _activate(y, activation):
    return jnp.tanh(y) if activation == "tanh" else jnp.maximum(y, 0.0)


# ---------------------------------------------------------------------------
# Kernels
# ---------------------------------------------------------------------------
def _make_fused_mlp_kernel(num_hidden, activation, compute_dtype):
    """x -> [Linear + act] * num_hidden -> Linear -> o, all in VMEM."""

    def kernel(x_ref, *refs):
        o_ref = refs[-1]
        params = refs[:-1]                    # [w0, b0, w1, b1, ..., w_out, b_out]
        h = x_ref[...].astype(jnp.float32)
        for li in range(num_hidden + 1):
            w = params[2 * li][...]                              # compute_dtype (bf16/f32)
            b = params[2 * li + 1][...].astype(jnp.float32)      # f32 bias
            y = jnp.dot(h.astype(compute_dtype), w,
                        preferred_element_type=jnp.float32) + b  # f32 accumulate
            if li < num_hidden:
                h = _activate(y, activation)
            else:
                o_ref[...] = y.astype(o_ref.dtype)

    return kernel


def _make_layer_kernel(activation, apply_act, compute_dtype):
    """Single Linear (+ optional activation) — used by the layer-wise fallback path."""

    def kernel(x_ref, w_ref, b_ref, o_ref):
        y = jnp.dot(x_ref[...].astype(compute_dtype), w_ref[...],
                    preferred_element_type=jnp.float32) + b_ref[...].astype(jnp.float32)
        if apply_act:
            y = _activate(y, activation)
        o_ref[...] = y.astype(o_ref.dtype)

    return kernel


# ---------------------------------------------------------------------------
# pallas_call wrappers
# ---------------------------------------------------------------------------
def _fused_vmem_bytes(x_pad, params_pad, tb):
    """Estimated VMEM need for the fused path: single-buffered weights, double-buffered
    activation/output tiles, in-kernel f32 intermediates, plus Mosaic scratch margin."""
    w_bytes = sum(int(p.size) * p.dtype.itemsize for p in params_pad)
    in_bytes = 2 * tb * int(x_pad.shape[1]) * x_pad.dtype.itemsize
    out_bytes = 2 * tb * int(params_pad[-1].shape[-1]) * 4
    widest = max(int(p.shape[-1]) for p in params_pad)
    live = 4 * tb * widest * 4                       # h(f32) + h(bf16) + y(f32) + headroom
    return w_bytes + in_bytes + out_bytes + live + (2 << 20)


def fused_mlp_forward(x_pad, params_pad, *, num_hidden, activation, tb, capacity):
    B_pad, in_dim = x_pad.shape
    out_dim = int(params_pad[-1].shape[-1])
    assert B_pad % tb == 0
    grid = (B_pad // tb,)
    compute_dtype = params_pad[0].dtype

    kernel = _make_fused_mlp_kernel(num_hidden, activation, compute_dtype)
    out_shape = jax.ShapeDtypeStruct((B_pad, out_dim), jnp.float32)
    vmem_limit = max(32 * 1024 * 1024, int(0.8 * capacity))

    # Advisory cost estimate for the XLA scheduler.
    flops, transcendentals = 0, 0
    bytes_accessed = int(x_pad.size) * x_pad.dtype.itemsize + B_pad * out_dim * 4
    for k in range(num_hidden + 1):
        w = params_pad[2 * k]
        b = params_pad[2 * k + 1]
        flops += 2 * B_pad * int(w.shape[0]) * int(w.shape[1])
        bytes_accessed += int(w.size) * w.dtype.itemsize + int(b.size) * b.dtype.itemsize
        if k < num_hidden and activation == "tanh":
            transcendentals += B_pad * int(w.shape[1])

    def build(single_buffer):
        in_specs = [pl.BlockSpec((tb, in_dim), lambda i: (i, 0))]
        in_specs += _weight_specs([p.shape for p in params_pad], single_buffer)
        out_spec = pl.BlockSpec((tb, out_dim), lambda i: (i, 0))
        return pl.pallas_call(
            kernel,
            out_shape=out_shape,
            grid_spec=pl.GridSpec(grid=grid, in_specs=in_specs, out_specs=out_spec),
            compiler_params=pltpu.CompilerParams(
                dimension_semantics=("parallel",),
                vmem_limit_bytes=vmem_limit,
            ),
            cost_estimate=pl.CostEstimate(
                flops=flops,
                transcendentals=transcendentals,
                bytes_accessed=bytes_accessed,
            ),
        )

    try:
        return build(True)(x_pad, *params_pad)
    except Exception:
        # Installed Pallas rejected Buffered(1): fall back to default double buffering.
        return build(False)(x_pad, *params_pad)


def linear_layer_forward(x_pad, w, b, *, activation, apply_act, tb, capacity):
    B_pad, in_dim = x_pad.shape
    n = int(w.shape[1])
    grid = (B_pad // tb,)
    compute_dtype = w.dtype
    kernel = _make_layer_kernel(activation, apply_act, compute_dtype)
    vmem_limit = max(32 * 1024 * 1024, int(0.8 * capacity))

    def build(single_buffer):
        in_specs = [pl.BlockSpec((tb, in_dim), lambda i: (i, 0))]
        in_specs += _weight_specs([w.shape, b.shape], single_buffer)
        out_spec = pl.BlockSpec((tb, n), lambda i: (i, 0))
        return pl.pallas_call(
            kernel,
            out_shape=jax.ShapeDtypeStruct((B_pad, n), jnp.float32),
            grid_spec=pl.GridSpec(grid=grid, in_specs=in_specs, out_specs=out_spec),
            compiler_params=pltpu.CompilerParams(
                dimension_semantics=("parallel",),
                vmem_limit_bytes=vmem_limit,
            ),
        )

    try:
        return build(True)(x_pad, w, b)
    except Exception:
        return build(False)(x_pad, w, b)


def mlp_forward(x_pad, params_pad, *, num_hidden, activation, tb, layerwise=None):
    capacity = _vmem_capacity_bytes()
    if layerwise is None:
        layerwise = _fused_vmem_bytes(x_pad, params_pad, tb) > int(0.7 * capacity)
    if not layerwise:
        return fused_mlp_forward(x_pad, params_pad, num_hidden=num_hidden,
                                 activation=activation, tb=tb, capacity=capacity)
    # Fallback: chain per-layer pallas_calls (weights resident per layer only).
    # TODO(synk): K/N-tiled contraction (P3 accumulator) for a single layer whose
    # weight alone exceeds VMEM; not needed for typical hidden sizes.
    h = x_pad
    for li in range(num_hidden + 1):
        w = params_pad[2 * li]
        bb = params_pad[2 * li + 1]
        h = linear_layer_forward(h, w, bb, activation=activation,
                                 apply_act=(li < num_hidden), tb=tb, capacity=capacity)
    return h


# ---------------------------------------------------------------------------
# Model
# ---------------------------------------------------------------------------
class NeuralNetPallas:
    """Mirrors NeuralNetTorch.forward: hidden Linear+activation layers, then output Linear."""

    def __init__(self, inputSize, hiddenLayers, hiddenSize, outputSize,
                 activeFunc="tanh", key=None, param_dtype=jnp.bfloat16):
        if key is None:
            key = jax.random.PRNGKey(0)
        self.activeFunc = "relu" if activeFunc == "relu" else "tanh"
        self.inputSize = int(inputSize)
        self.hiddenSize = int(hiddenSize)
        self.outputSize = int(outputSize)
        self.param_dtype = param_dtype
        # Torch module always creates at least one hidden layer.
        self.num_hidden = max(1, int(hiddenLayers))

        # v6e MXU is 256-wide: align hidden dims to 256 when they are already >=256.
        hid_align = 256 if hiddenSize >= 256 else _LANE
        self.hid_pad = _round_up(hiddenSize, hid_align)
        self.out_pad = _round_up(outputSize, _LANE)

        dims = [self.inputSize] + [self.hiddenSize] * self.num_hidden + [self.outputSize]
        # First weight keeps its true fan_in (input is NOT lane-padded on the host).
        pdims = [self.inputSize] + [self.hid_pad] * self.num_hidden + [self.out_pad]

        self.params = []       # unpadded f32 (w, b) for the reference path
        self.params_pad = []   # zero-padded flat list [w0, b0, ..., w_out, b_out] for kernels
        for li in range(self.num_hidden + 1):
            key, wk = jax.random.split(key)
            fan_in, fan_out = dims[li], dims[li + 1]
            # xavier_normal_: std = sqrt(2 / (fan_in + fan_out)); bias filled 0.01
            std = (2.0 / (fan_in + fan_out)) ** 0.5
            w = std * jax.random.normal(wk, (fan_in, fan_out), dtype=jnp.float32)
            b = jnp.full((1, fan_out), 0.01, dtype=jnp.float32)
            self.params.append((w, b))

            # Zero padding keeps padded activation columns exactly 0 through tanh/relu,
            # so the real outputs match the unpadded model; padded cols are sliced off.
            wp = jnp.zeros((pdims[li], pdims[li + 1]), dtype=jnp.float32)
            wp = wp.at[:fan_in, :fan_out].set(w).astype(param_dtype)
            bp = jnp.zeros((1, pdims[li + 1]), dtype=jnp.float32)
            bp = bp.at[:, :fan_out].set(b)           # biases stay f32
            self.params_pad.extend([wp, bp])

    def forward(self, x, layerwise=None):
        x = jnp.asarray(x, dtype=jnp.float32)
        B = x.shape[0]
        tb, B_pad = _choose_batch_tiling(B)
        if B_pad != B:
            x = jnp.pad(x, ((0, B_pad - B), (0, 0)))   # pad only the batch remainder
        out_p = mlp_forward(
            x, self.params_pad,
            num_hidden=self.num_hidden,
            activation=self.activeFunc,
            tb=tb,
            layerwise=layerwise,
        )
        return out_p[:B, :self.outputSize]

    def forward_ref(self, x):
        """Pure-JAX reference replicating the kernel's dtype policy (weights in
        param_dtype, f32 accumulation), for apples-to-apples validation."""
        act = (lambda v: jnp.tanh(v)) if self.activeFunc == "tanh" else (lambda v: jnp.maximum(v, 0.0))
        h = jnp.asarray(x, jnp.float32)
        n_layers = len(self.params)
        for li, (w, b) in enumerate(self.params):
            y = jnp.dot(h.astype(self.param_dtype), w.astype(self.param_dtype),
                        preferred_element_type=jnp.float32) + b
            h = act(y) if li < n_layers - 1 else y
        return h

    # TODO(synk): trainModel / calculateError / setContiniousValue / predict-time
    # thresholding are host-side training-loop / data-prep code with no Pallas
    # kernel equivalent; only forward is implemented.


if __name__ == "__main__":
    key = jax.random.PRNGKey(0)
    key, xk, mk = jax.random.split(key, 3)

    batch = 8
    inputSize = 16
    hiddenLayers = 2
    hiddenSize = 32
    outputSize = 4

    x = jax.random.normal(xk, (batch, inputSize), dtype=jnp.float32)

    # 1) f32-weight model: tight numerical validation of the fused kernel.
    model_f32 = NeuralNetPallas(inputSize, hiddenLayers, hiddenSize, outputSize,
                                activeFunc="tanh", key=mk, param_dtype=jnp.float32)
    out_f32 = jax.block_until_ready(model_f32.forward(x))
    ref_f32 = model_f32.forward_ref(x)
    assert out_f32.shape == (batch, outputSize)
    assert jnp.allclose(out_f32, ref_f32, atol=1e-5, rtol=1e-5), "f32 mismatch vs reference"

    # 2) bf16-weight model (default perf path): compare against matching bf16 reference.
    model_bf16 = NeuralNetPallas(inputSize, hiddenLayers, hiddenSize, outputSize,
                                 activeFunc="tanh", key=mk)
    out_bf16 = jax.block_until_ready(model_bf16.forward(x))
    ref_bf16 = model_bf16.forward_ref(x)
    assert out_bf16.shape == (batch, outputSize)
    assert jnp.allclose(out_bf16, ref_bf16, atol=5e-3, rtol=5e-3), "bf16 mismatch vs reference"

    # 3) Exercise the layer-wise fallback path (used when resident weights exceed VMEM).
    out_lw = jax.block_until_ready(model_bf16.forward(x, layerwise=True))
    assert jnp.allclose(out_lw, ref_bf16, atol=5e-3, rtol=5e-3), "layerwise mismatch vs reference"

    print("KERNEL_OK")
</pallas_src>

<mosaic_0001>
module attributes {stable_mosaic.version = 11 : i64} {
  func.func @kernel(%arg0: i32, %arg1: memref<8x16xf32, #tpu.memory_space<vmem>>, %arg2: memref<16x128xf32, #tpu.memory_space<vmem>>, %arg3: memref<1x128xf32, #tpu.memory_space<vmem>>, %arg4: memref<128x128xf32, #tpu.memory_space<vmem>>, %arg5: memref<1x128xf32, #tpu.memory_space<vmem>>, %arg6: memref<128x128xf32, #tpu.memory_space<vmem>>, %arg7: memref<1x128xf32, #tpu.memory_space<vmem>>, %arg8: memref<8x128xf32, #tpu.memory_space<vmem>>) attributes {dimension_semantics = [#tpu.dimension_semantics<parallel>], iteration_bounds = array<i64: 1>, scalar_prefetch = 0 : i64, scratch_operands = 0 : i64, tpu.core_type = #tpu.core_type<tc>, window_params = [{transform_indices = @transform_0, window_bounds = array<i64: 8, 16>}, {pipeline_mode = #tpu.pipeline_mode<synchronous>, transform_indices = @transform_1, window_bounds = array<i64: 16, 128>}, {pipeline_mode = #tpu.pipeline_mode<synchronous>, transform_indices = @transform_2, window_bounds = array<i64: 1, 128>}, {pipeline_mode = #tpu.pipeline_mode<synchronous>, transform_indices = @transform_3, window_bounds = array<i64: 128, 128>}, {pipeline_mode = #tpu.pipeline_mode<synchronous>, transform_indices = @transform_4, window_bounds = array<i64: 1, 128>}, {pipeline_mode = #tpu.pipeline_mode<synchronous>, transform_indices = @transform_5, window_bounds = array<i64: 128, 128>}, {pipeline_mode = #tpu.pipeline_mode<synchronous>, transform_indices = @transform_6, window_bounds = array<i64: 1, 128>}, {transform_indices = @transform_7, window_bounds = array<i64: 8, 128>}]} {
    %c0 = arith.constant 0 : index
    %c0_0 = arith.constant 0 : index
    %0 = vector.load %arg1[%c0, %c0_0] : memref<8x16xf32, #tpu.memory_space<vmem>>, vector<8x16xf32>
    %c0_1 = arith.constant 0 : index
    %c0_2 = arith.constant 0 : index
    %1 = vector.load %arg2[%c0_1, %c0_2] : memref<16x128xf32, #tpu.memory_space<vmem>>, vector<16x128xf32>
    %c0_3 = arith.constant 0 : index
    %c0_4 = arith.constant 0 : index
    %2 = vector.load %arg3[%c0_3, %c0_4] : memref<1x128xf32, #tpu.memory_space<vmem>>, vector<1x128xf32>
    %cst = arith.constant dense<0.000000e+00> : vector<8x128xf32>
    %3 = tpu.matmul %0, %1, %cst {dimension_numbers = #tpu.dot_dimension_numbers<[1], [0], [0], [1], [0, 0, 1, 1], [], []>} : vector<8x16xf32>, vector<16x128xf32>, vector<8x128xf32> -> vector<8x128xf32>
    %4 = vector.broadcast %2 : vector<1x128xf32> to vector<8x128xf32>
    %5 = arith.addf %3, %4 : vector<8x128xf32>
    %6 = math.tanh %5 : vector<8x128xf32>
    %c0_5 = arith.constant 0 : index
    %c0_6 = arith.constant 0 : index
    %7 = vector.load %arg4[%c0_5, %c0_6] : memref<128x128xf32, #tpu.memory_space<vmem>>, vector<128x128xf32>
    %c0_7 = arith.constant 0 : index
    %c0_8 = arith.constant 0 : index
    %8 = vector.load %arg5[%c0_7, %c0_8] : memref<1x128xf32, #tpu.memory_space<vmem>>, vector<1x128xf32>
    %cst_9 = arith.constant dense<0.000000e+00> : vector<8x128xf32>
    %9 = tpu.matmul %6, %7, %cst_9 {dimension_numbers = #tpu.dot_dimension_numbers<[1], [0], [0], [1], [0, 0, 1, 1], [], []>} : vector<8x128xf32>, vector<128x128xf32>, vector<8x128xf32> -> vector<8x128xf32>
    %10 = vector.broadcast %8 : vector<1x128xf32> to vector<8x128xf32>
    %11 = arith.addf %9, %10 : vector<8x128xf32>
    %12 = math.tanh %11 : vector<8x128xf32>
    %c0_10 = arith.constant 0 : index
    %c0_11 = arith.constant 0 : index
    %13 = vector.load %arg6[%c0_10, %c0_11] : memref<128x128xf32, #tpu.memory_space<vmem>>, vector<128x128xf32>
    %c0_12 = arith.constant 0 : index
    %c0_13 = arith.constant 0 : index
    %14 = vector.load %arg7[%c0_12, %c0_13] : memref<1x128xf32, #tpu.memory_space<vmem>>, vector<1x128xf32>
    %cst_14 = arith.constant dense<0.000000e+00> : vector<8x128xf32>
    %15 = tpu.matmul %12, %13, %cst_14 {dimension_numbers = #tpu.dot_dimension_numbers<[1], [0], [0], [1], [0, 0, 1, 1], [], []>} : vector<8x128xf32>, vector<128x128xf32>, vector<8x128xf32> -> vector<8x128xf32>
    %16 = vector.broadcast %14 : vector<1x128xf32> to vector<8x128xf32>
    %17 = arith.addf %15, %16 : vector<8x128xf32>
    %c0_15 = arith.constant 0 : index
    %c0_16 = arith.constant 0 : index
    %18 = vector.load %arg8[%c0_15, %c0_16] : memref<8x128xf32, #tpu.memory_space<vmem>>, vector<8x128xf32>
    tpu.vector_store %arg8[%c0_15, %c0_16], %17 {strides = array<i32>} : memref<8x128xf32, #tpu.memory_space<vmem>>, vector<8x128xf32>,
    return
  }
  func.func @transform_0(%arg0: i32) -> (i32, i32) {
    %c0_i32 = arith.constant 0 : i32
    %c0_i32_0 = arith.constant 0 : i32
    return %arg0, %c0_i32 : i32, i32
  }
  func.func @transform_1(%arg0: i32) -> (i32, i32) {
    %c0_i32 = arith.constant 0 : i32
    %c0_i32_0 = arith.constant 0 : i32
    %c0_i32_1 = arith.constant 0 : i32
    return %c0_i32, %c0_i32_0 : i32, i32
  }
  func.func @transform_2(%arg0: i32) -> (i32, i32) {
    %c0_i32 = arith.constant 0 : i32
    %c0_i32_0 = arith.constant 0 : i32
    %c0_i32_1 = arith.constant 0 : i32
    return %c0_i32, %c0_i32_0 : i32, i32
  }
  func.func @transform_3(%arg0: i32) -> (i32, i32) {
    %c0_i32 = arith.constant 0 : i32
    %c0_i32_0 = arith.constant 0 : i32
    %c0_i32_1 = arith.constant 0 : i32
    return %c0_i32, %c0_i32_0 : i32, i32
  }
  func.func @transform_4(%arg0: i32) -> (i32, i32) {
    %c0_i32 = arith.constant 0 : i32
    %c0_i32_0 = arith.constant 0 : i32
    %c0_i32_1 = arith.constant 0 : i32
    return %c0_i32, %c0_i32_0 : i32, i32
  }
  func.func @transform_5(%arg0: i32) -> (i32, i32) {
    %c0_i32 = arith.constant 0 : i32
    %c0_i32_0 = arith.constant 0 : i32
    %c0_i32_1 = arith.constant 0 : i32
    return %c0_i32, %c0_i32_0 : i32, i32
  }
  func.func @transform_6(%arg0: i32) -> (i32, i32) {
    %c0_i32 = arith.constant 0 : i32
    %c0_i32_0 = arith.constant 0 : i32
    %c0_i32_1 = arith.constant 0 : i32
    return %c0_i32, %c0_i32_0 : i32, i32
  }
  func.func @transform_7(%arg0: i32) -> (i32, i32) {
    %c0_i32 = arith.constant 0 : i32
    %c0_i32_0 = arith.constant 0 : i32
    return %arg0, %c0_i32 : i32, i32
  }
}

module attributes {stable_mosaic.version = 11 : i64} {
  func.func @kernel(%arg0: i32, %arg1: memref<8x16xf32, #tpu.memory_space<vmem>>, %arg2: memref<16x128xf32, #tpu.memory_space<vmem>>, %arg3: memref<1x128xf32, #tpu.memory_space<vmem>>, %arg4: memref<128x128xf32, #tpu.memory_space<vmem>>, %arg5: memref<1x128xf32, #tpu.memory_space<vmem>>, %arg6: memref<128x128xf32, #tpu.memory_space<vmem>>, %arg7: memref<1x128xf32, #tpu.memory_space<vmem>>, %arg8: memref<8x128xf32, #tpu.memory_space<vmem>>) attributes {dimension_semantics = [#tpu.dimension_semantics<parallel>], iteration_bounds = array<i64: 1>, scalar_prefetch = 0 : i64, scratch_operands = 0 : i64, tpu.core_type = #tpu.core_type<tc>, window_params = [{transform_indices = @transform_0, window_bounds = array<i64: 8, 16>}, {pipeline_mode = #tpu.pipeline_mode<synchronous>, transform_indices = @transform_1, window_bounds = array<i64: 16, 128>}, {pipeline_mode = #tpu.pipeline_mode<synchronous>, transform_indices = @transform_2, window_bounds = array<i64: 1, 128>}, {pipeline_mode = #tpu.pipeline_mode<synchronous>, transform_indices = @transform_3, window_bounds = array<i64: 128, 128>}, {pipeline_mode = #tpu.pipeline_mode<synchronous>, transform_indices = @transform_4, window_bounds = array<i64: 1, 128>}, {pipeline_mode = #tpu.pipeline_mode<synchronous>, transform_indices = @transform_5, window_bounds = array<i64: 128, 128>}, {pipeline_mode = #tpu.pipeline_mode<synchronous>, transform_indices = @transform_6, window_bounds = array<i64: 1, 128>}, {transform_indices = @transform_7, window_bounds = array<i64: 8, 128>}]} {
    %c0 = arith.constant 0 : index
    %c0_0 = arith.constant 0 : index
    %0 = vector.load %arg1[%c0, %c0_0] : memref<8x16xf32, #tpu.memory_space<vmem>>, vector<8x16xf32>
    %c0_1 = arith.constant 0 : index
    %c0_2 = arith.constant 0 : index
    %1 = vector.load %arg2[%c0_1, %c0_2] : memref<16x128xf32, #tpu.memory_space<vmem>>, vector<16x128xf32>
    %c0_3 = arith.constant 0 : index
    %c0_4 = arith.constant 0 : index
    %2 = vector.load %arg3[%c0_3, %c0_4] : memref<1x128xf32, #tpu.memory_space<vmem>>, vector<1x128xf32>
    %cst = arith.constant dense<0.000000e+00> : vector<8x128xf32>
    %3 = tpu.matmul %0, %1, %cst {dimension_numbers = #tpu.dot_dimension_numbers<[1], [0], [0], [1], [0, 0, 1, 1], [], []>} : vector<8x16xf32>, vector<16x128xf32>, vector<8x128xf32> -> vector<8x128xf32>
    %4 = vector.broadcast %2 : vector<1x128xf32> to vector<8x128xf32>
    %5 = arith.addf %3, %4 : vector<8x128xf32>
    %6 = math.tanh %5 : vector<8x128xf32>
    %c0_5 = arith.constant 0 : index
    %c0_6 = arith.constant 0 : index
    %7 = vector.load %arg4[%c0_5, %c0_6] : memref<128x128xf32, #tpu.memory_space<vmem>>, vector<128x128xf32>
    %c0_7 = arith.constant 0 : index
    %c0_8 = arith.constant 0 : index
    %8 = vector.load %arg5[%c0_7, %c0_8] : memref<1x128xf32, #tpu.memory_space<vmem>>, vector<1x128xf32>
    %cst_9 = arith.constant dense<0.000000e+00> : vector<8x128xf32>
    %9 = tpu.matmul %6, %7, %cst_9 {dimension_numbers = #tpu.dot_dimension_numbers<[1], [0], [0], [1], [0, 0, 1, 1], [], []>} : vector<8x128xf32>, vector<128x128xf32>, vector<8x128xf32> -> vector<8x128xf32>
    %10 = vector.broadcast %8 : vector<1x128xf32> to vector<8x128xf32>
    %11 = arith.addf %9, %10 : vector<8x128xf32>
    %12 = math.tanh %11 : vector<8x128xf32>
    %c0_10 = arith.constant 0 : index
    %c0_11 = arith.constant 0 : index
    %13 = vector.load %arg6[%c0_10, %c0_11] : memref<128x128xf32, #tpu.memory_space<vmem>>, vector<128x128xf32>
    %c0_12 = arith.constant 0 : index
    %c0_13 = arith.constant 0 : index
    %14 = vector.load %arg7[%c0_12, %c0_13] : memref<1x128xf32, #tpu.memory_space<vmem>>, vector<1x128xf32>
    %cst_14 = arith.constant dense<0.000000e+00> : vector<8x128xf32>
    %15 = tpu.matmul %12, %13, %cst_14 {dimension_numbers = #tpu.dot_dimension_numbers<[1], [0], [0], [1], [0, 0, 1, 1], [], []>} : vector<8x128xf32>, vector<128x128xf32>, vector<8x128xf32> -> vector<8x128xf32>
    %16 = vector.broadcast %14 : vector<1x128xf32> to vector<8x128xf32>
    %17 = arith.addf %15, %16 : vector<8x128xf32>
    %c0_15 = arith.constant 0 : index
    %c0_16 = arith.constant 0 : index
    %18 = vector.load %arg8[%c0_15, %c0_16] : memref<8x128xf32, #tpu.memory_space<vmem>>, vector<8x128xf32>
    tpu.vector_store %arg8[%c0_15, %c0_16], %17 {strides = array<i32>} : memref<8x128xf32, #tpu.memory_space<vmem>>, vector<8x128xf32>,
    return
  }
  func.func @transform_0(%arg0: i32) -> (i32, i32) {
    %c0_i32 = arith.constant 0 : i32
    %c0_i32_0 = arith.constant 0 : i32
    return %arg0, %c0_i32 : i32, i32
  }
  func.func @transform_1(%arg0: i32) -> (i32, i32) {
    %c0_i32 = arith.constant 0 : i32
    %c0_i32_0 = arith.constant 0 : i32
    %c0_i32_1 = arith.constant 0 : i32
    return %c0_i32, %c0_i32_0 : i32, i32
  }
  func.func @transform_2(%arg0: i32) -> (i32, i32) {
    %c0_i32 = arith.constant 0 : i32
    %c0_i32_0 = arith.constant 0 : i32
    %c0_i32_1 = arith.constant 0 : i32
    return %c0_i32, %c0_i32_0 : i32, i32
  }
  func.func @transform_3(%arg0: i32) -> (i32, i32) {
    %c0_i32 = arith.constant 0 : i32
    %c0_i32_0 = arith.constant 0 : i32
    %c0_i32_1 = arith.constant 0 : i32
    return %c0_i32, %c0_i32_0 : i32, i32
  }
  func.func @transform_4(%arg0: i32) -> (i32, i32) {
    %c0_i32 = arith.constant 0 : i32
    %c0_i32_0 = arith.constant 0 : i32
    %c0_i32_1 = arith.constant 0 : i32
    return %c0_i32, %c0_i32_0 : i32, i32
  }
  func.func @transform_5(%arg0: i32) -> (i32, i32) {
    %c0_i32 = arith.constant 0 : i32
    %c0_i32_0 = arith.constant 0 : i32
    %c0_i32_1 = arith.constant 0 : i32
    return %c0_i32, %c0_i32_0 : i32, i32
  }
  func.func @transform_6(%arg0: i32) -> (i32, i32) {
    %c0_i32 = arith.constant 0 : i32
    %c0_i32_0 = arith.constant 0 : i32
    %c0_i32_1 = arith.constant 0 : i32
    return %c0_i32, %c0_i32_0 : i32, i32
  }
  func.func @transform_7(%arg0: i32) -> (i32, i32) {
    %c0_i32 = arith.constant 0 : i32
    %c0_i32_0 = arith.constant 0 : i32
    return %arg0, %c0_i32 : i32, i32
  }
}

</mosaic_0001>

<llo_original>
// kernel: tpu_custom_call.1
$region0: #{tpu_custom_call.1}
  #allocation0 [shape = 'u32[]', space=smem, size = 0x4, offset = 0x4, fixed_abs, tag = 'smem constant byte address 0x4 - core index']
  #allocation1 [shape = 'u32[72,128]{1,0:T(1,128)}', space=vmem, size = 0x9000, scoped, tag = 'internal scratch']
  %s0 = inlined_call_operand.hbm [shape: f32[8,16], index: 0, kind: input, shape index: {}]
  %s1 = inlined_call_operand.hbm [shape: f32[16,128], index: 1, kind: input, shape index: {}]
  %s2 = inlined_call_operand.vmem [shape: f32[1,128], index: 2, kind: input, shape index: {}]
  %s3 = inlined_call_operand.hbm [shape: f32[128,128], index: 3, kind: input, shape index: {}]
  %s4 = inlined_call_operand.vmem [shape: f32[1,128], index: 4, kind: input, shape index: {}]
  %s5 = inlined_call_operand.hbm [shape: f32[128,128], index: 5, kind: input, shape index: {}]
  %s6 = inlined_call_operand.vmem [shape: f32[1,128], index: 6, kind: input, shape index: {}]
  %s7 = inlined_call_operand.hbm [shape: f32[8,128], index: 7, kind: output, shape index: {}]
  %s8 = sld [smem:[#allocation0]]
  $region54: #{tpu_custom_call.1} parent=0
    _
  %s10 = ssub.s32 1, %s8
  %s11 = scalar_select 0, %s10, %s8
  $region1: #{tpu_custom_call.1} parent=0
    #allocation2 [shape = 'u8[4096]{0}', space=vmem, size = 0x1000, scoped, tag = 'input window, operand 0, single buffered']
    #allocation3 [shape = 's32[1]{0}', space=sflag, size = 0x4, scoped, tag = 'scoped memory for tpu_custom_call.1']
    #allocation4 [shape = 's32[1]{0}', space=sflag, size = 0x4, scoped, tag = 'scoped memory for tpu_custom_call.1']
    #allocation5 [shape = 'u8[8192]{0}', space=vmem, size = 0x2000, scoped, tag = 'input window, operand 1, single buffered']
    #allocation6 [shape = 's32[1]{0}', space=sflag, size = 0x4, scoped, tag = 'scoped memory for tpu_custom_call.1']
    #allocation7 [shape = 'u8[65536]{0}', space=vmem, size = 0x10000, scoped, tag = 'input window, operand 3, single buffered']
    #allocation8 [shape = 'u8[65536]{0}', space=vmem, size = 0x10000, scoped, tag = 'input window, operand 5, single buffered']
    #allocation9 [shape = 's32[1]{0}', space=sflag, size = 0x4, scoped, tag = 'scoped memory for tpu_custom_call.1']
    #allocation10 [shape = 'u8[4096]{0}', space=vmem, size = 0x1000, scoped, tag = 'output window, operand 0, single buffered']
    %12 = vsyncpa [#allocation3], 0
    %13 = vsyncpa [#allocation6], 0
    %14 = vsyncpa [#allocation9], 0
    %15 = vsyncpa [#allocation4], 0
    // Predicated region
    $region2: #{tpu_custom_call.1} parent=1 // pred_check
      _
    $region3: #{tpu_custom_call.1} parent=1 // pred_check_branch
      %17 = sbr.rel (0) target = $region5
    $region4: #{tpu_custom_call.1} parent=1 // pred_region
      %19 = vsyncadd [#allocation3], 0
      %s21 = sshll.u32 %s0, 4
      %s22 = int_to_ptr.hbm [resolvable:$true] %s21
      %s23 = sshll.u32 [#allocation2], 4
      %s24 = int_to_ptr.vmem [resolvable:$true] %s23
      %26 = dma.hbm_to_vmem [thread:$0]  %s22, 128, %s24, [#allocation3]
    $region5: #{tpu_custom_call.1} parent=1 // pred_fallthru
      _
    // Predicated region
    $region6: #{tpu_custom_call.1} parent=1 // pred_check
      _
    $region7: #{tpu_custom_call.1} parent=1 // pred_check_branch
      %28 = sbr.rel (0) target = $region9
    $region8: #{tpu_custom_call.1} parent=1 // pred_region
      %30 = vsyncadd [#allocation6], 0
      %s31 = sshll.u32 %s1, 4
      %s32 = int_to_ptr.hbm [resolvable:$true] %s31
      %s33 = sshll.u32 [#allocation5], 4
      %s34 = int_to_ptr.vmem [resolvable:$true] %s33
      %39 = dma.hbm_to_vmem [thread:$0]  %s32, 256, %s34, [#allocation6], 128, 128, 8
    $region9: #{tpu_custom_call.1} parent=1 // pred_fallthru
      _
    // Predicated region
    $region10: #{tpu_custom_call.1} parent=1 // pred_check
      _
    $region11: #{tpu_custom_call.1} parent=1 // pred_check_branch
      %41 = sbr.rel (0) target = $region13
    $region12: #{tpu_custom_call.1} parent=1 // pred_region
      _
    $region13: #{tpu_custom_call.1} parent=1 // pred_fallthru
      _
    // Predicated region
    $region14: #{tpu_custom_call.1} parent=1 // pred_check
      _
    $region15: #{tpu_custom_call.1} parent=1 // pred_check_branch
      %43 = sbr.rel (0) target = $region17
    $region16: #{tpu_custom_call.1} parent=1 // pred_region
      %45 = vsyncadd [#allocation6], 0
      %s46 = sshll.u32 %s3, 4
      %s47 = int_to_ptr.hbm [resolvable:$true] %s46
      %s48 = sshll.u32 [#allocation7], 4
      %s49 = int_to_ptr.vmem [resolvable:$true] %s48
      %54 = dma.hbm_to_vmem [thread:$0]  %s47, 2048, %s49, [#allocation6], 128, 128, 8
    $region17: #{tpu_custom_call.1} parent=1 // pred_fallthru
      _
    // Predicated region
    $region18: #{tpu_custom_call.1} parent=1 // pred_check
      _
    $region19: #{tpu_custom_call.1} parent=1 // pred_check_branch
      %56 = sbr.rel (0) target = $region21
    $region20: #{tpu_custom_call.1} parent=1 // pred_region
      _
    $region21: #{tpu_custom_call.1} parent=1 // pred_fallthru
      _
    // Predicated region
    $region22: #{tpu_custom_call.1} parent=1 // pred_check
      _
    $region23: #{tpu_custom_call.1} parent=1 // pred_check_branch
      %58 = sbr.rel (0) target = $region25
    $region24: #{tpu_custom_call.1} parent=1 // pred_region
      %60 = vsyncadd [#allocation9], 0
      %s61 = sshll.u32 %s5, 4
      %s62 = int_to_ptr.hbm [resolvable:$true] %s61
      %s63 = sshll.u32 [#allocation8], 4
      %s64 = int_to_ptr.vmem [resolvable:$true] %s63
      %69 = dma.hbm_to_vmem [thread:$0]  %s62, 2048, %s64, [#allocation9], 128, 128, 8
    $region25: #{tpu_custom_call.1} parent=1 // pred_fallthru
      _
    // Predicated region
    $region26: #{tpu_custom_call.1} parent=1 // pred_check
      _
    $region27: #{tpu_custom_call.1} parent=1 // pred_check_branch
      %71 = sbr.rel (0) target = $region29
    $region28: #{tpu_custom_call.1} parent=1 // pred_region
      _
    $region29: #{tpu_custom_call.1} parent=1 // pred_fallthru
      _
    // Predicated region
    $region30: #{tpu_custom_call.1} parent=1 // pred_check
      _
    $region31: #{tpu_custom_call.1} parent=1 // pred_check_branch
      %73 = sbr.rel (0) target = $region33
    $region32: #{tpu_custom_call.1} parent=1 // pred_region
      %75 = dma.done [#allocation3], 128
    $region33: #{tpu_custom_call.1} parent=1 // pred_fallthru
      _
    // Predicated region
    $region34: #{tpu_custom_call.1} parent=1 // pred_check
      _
    $region35: #{tpu_custom_call.1} parent=1 // pred_check_branch
      %77 = sbr.rel (0) target = $region37
    $region36: #{tpu_custom_call.1} parent=1 // pred_region
      %79 = dma.done [#allocation6], 256
    $region37: #{tpu_custom_call.1} parent=1 // pred_fallthru
      _
    // Predicated region
    $region38: #{tpu_custom_call.1} parent=1 // pred_check
      _
    $region39: #{tpu_custom_call.1} parent=1 // pred_check_branch
      %81 = sbr.rel (0) target = $region41
    $region40: #{tpu_custom_call.1} parent=1 // pred_region
      %83 = dma.done [#allocation6], 2048
    $region41: #{tpu_custom_call.1} parent=1 // pred_fallthru
      _
    // Predicated region
    $region42: #{tpu_custom_call.1} parent=1 // pred_check
      _
    $region43: #{tpu_custom_call.1} parent=1 // pred_check_branch
      %85 = sbr.rel (0) target = $region45
    $region44: #{tpu_custom_call.1} parent=1 // pred_region
      %87 = dma.done [#allocation9], 2048
    $region45: #{tpu_custom_call.1} parent=1 // pred_fallthru
      _
    %v88 = vld [vmem:[#allocation2] sm:$0xff]
    %v89 = vld [vmem:[#allocation5] sm:$0xff]
    %v90 = vld [vmem:[#allocation5 + $0x8] sm:$0xff]
    %v91 = vld [vmem:[%s2] sm:$0x1]
    %v93 = vperm.slane %v91, 0
    %vm95 = vcmask 130048
    %v97 = vsel %vm95, %v88, 0
    %99 = vmatpush.msra.mxu0 0.0
    %100 = vmatpush.msra.mxu0 0.0
    %101 = vmatpush.msra.mxu0 0.0
    %102 = vmatpush.msra.mxu0 0.0
    %103 = vmatpush.msra.mxu0 0.0
    %104 = vmatpush.msra.mxu0 0.0
    %105 = vmatpush.msra.mxu0 0.0
    %106 = vmatpush.msra.mxu0 0.0
    %107 = vmatpush.msra.mxu0 0.0
    %108 = vmatpush.msra.mxu0 0.0
    %109 = vmatpush.msra.mxu0 0.0
    %110 = vmatpush.msra.mxu0 0.0
    %111 = vmatpush.msra.mxu0 0.0
    %112 = vmatpush.msra.mxu0 0.0
    %113 = vmatpush.msra.mxu0 %v90
    %114 = vmatpush.msra.mxu0 %v89
    %115 = vmatmul.f32.gmra.mxu0 %v97
    %v116 = vpop.f32.mrf.mxu0
    %v117 = vadd.f32 %v93, %v116
    %118 = vdwg.mxu0
    %v119 = vtanh.pop %v117
    %v120 = vld [vmem:[#allocation7] sm:$0xff]
    %v121 = vld [vmem:[#allocation7 + $0x8] sm:$0xff]
    %v122 = vld [vmem:[#allocation7 + $0x10] sm:$0xff]
    %v123 = vld [vmem:[#allocation7 + $0x18] sm:$0xff]
    %v124 = vld [vmem:[#allocation7 + $0x20] sm:$0xff]
    %v125 = vld [vmem:[#allocation7 + $0x28] sm:$0xff]
    %v126 = vld [vmem:[#allocation7 + $0x30] sm:$0xff]
    %v127 = vld [vmem:[#allocation7 + $0x38] sm:$0xff]
    %v128 = vld [vmem:[#allocation7 + $0x40] sm:$0xff]
    %v129 = vld [vmem:[#allocation7 + $0x48] sm:$0xff]
    %v130 = vld [vmem:[#allocation7 + $0x50] sm:$0xff]
    %v131 = vld [vmem:[#allocation7 + $0x58] sm:$0xff]
    %v132 = vld [vmem:[#allocation7 + $0x60] sm:$0xff]
    %v133 = vld [vmem:[#allocation7 + $0x68] sm:$0xff]
    %v134 = vld [vmem:[#allocation7 + $0x70] sm:$0xff]
    %v135 = vld [vmem:[#allocation7 + $0x78] sm:$0xff]
    %v136 = vld [vmem:[%s4] sm:$0x1]
    %v138 = vperm.slane %v136, 0
    %140 = vmatpush.msra.mxu0 %v135
    %141 = vmatpush.msra.mxu0 %v134
    %142 = vmatpush.msra.mxu0 %v133
    %143 = vmatpush.msra.mxu0 %v132
    %144 = vmatpush.msra.mxu0 %v131
    %145 = vmatpush.msra.mxu0 %v130
    %146 = vmatpush.msra.mxu0 %v129
    %147 = vmatpush.msra.mxu0 %v128
    %148 = vmatpush.msra.mxu0 %v127
    %149 = vmatpush.msra.mxu0 %v126
    %150 = vmatpush.msra.mxu0 %v125
    %151 = vmatpush.msra.mxu0 %v124
    %152 = vmatpush.msra.mxu0 %v123
    %153 = vmatpush.msra.mxu0 %v122
    %154 = vmatpush.msra.mxu0 %v121
    %155 = vmatpush.msra.mxu0 %v120
    %156 = vmatmul.f32.gmra.mxu0 %v119
    %v157 = vpop.f32.mrf.mxu0
    %v158 = vadd.f32 %v138, %v157
    %159 = vdwg.mxu0
    %v160 = vtanh.pop %v158
    %v161 = vld [vmem:[#allocation8] sm:$0xff]
    %v162 = vld [vmem:[#allocation8 + $0x8] sm:$0xff]
    %v163 = vld [vmem:[#allocation8 + $0x10] sm:$0xff]
    %v164 = vld [vmem:[#allocation8 + $0x18] sm:$0xff]
    %v165 = vld [vmem:[#allocation8 + $0x20] sm:$0xff]
    %v166 = vld [vmem:[#allocation8 + $0x28] sm:$0xff]
    %v167 = vld [vmem:[#allocation8 + $0x30] sm:$0xff]
    %v168 = vld [vmem:[#allocation8 + $0x38] sm:$0xff]
    %v169 = vld [vmem:[#allocation8 + $0x40] sm:$0xff]
    %v170 = vld [vmem:[#allocation8 + $0x48] sm:$0xff]
    %v171 = vld [vmem:[#allocation8 + $0x50] sm:$0xff]
    %v172 = vld [vmem:[#allocation8 + $0x58] sm:$0xff]
    %v173 = vld [vmem:[#allocation8 + $0x60] sm:$0xff]
    %v174 = vld [vmem:[#allocation8 + $0x68] sm:$0xff]
    %v175 = vld [vmem:[#allocation8 + $0x70] sm:$0xff]
    %v176 = vld [vmem:[#allocation8 + $0x78] sm:$0xff]
    %v177 = vld [vmem:[%s6] sm:$0x1]
    %v179 = vperm.slane %v177, 0
    %181 = vmatpush.msra.mxu0 %v176
    %182 = vmatpush.msra.mxu0 %v175
    %183 = vmatpush.msra.mxu0 %v174
    %184 = vmatpush.msra.mxu0 %v173
    %185 = vmatpush.msra.mxu0 %v172
    %186 = vmatpush.msra.mxu0 %v171
    %187 = vmatpush.msra.mxu0 %v170
    %188 = vmatpush.msra.mxu0 %v169
    %189 = vmatpush.msra.mxu0 %v168
    %190 = vmatpush.msra.mxu0 %v167
    %191 = vmatpush.msra.mxu0 %v166
    %192 = vmatpush.msra.mxu0 %v165
    %193 = vmatpush.msra.mxu0 %v164
    %194 = vmatpush.msra.mxu0 %v163
    %195 = vmatpush.msra.mxu0 %v162
    %196 = vmatpush.msra.mxu0 %v161
    %197 = vmatmul.f32.gmra.mxu0 %v160
    %v198 = vpop.f32.mrf.mxu0
    %v199 = vadd.f32 %v179, %v198
    %200 = vdwg.mxu0
    %201 = vst [vmem:[#allocation10] sm:$0xff] %v199
    // Predicated region
    $region46: #{tpu_custom_call.1} parent=1 // pred_check
      _
    $region47: #{tpu_custom_call.1} parent=1 // pred_check_branch
      %203 = sbr.rel (0) target = $region49
    $region48: #{tpu_custom_call.1} parent=1 // pred_region
      %205 = vsyncadd [#allocation4], 0
      %s207 = sshll.u32 [#allocation10], 4
      %s208 = int_to_ptr.vmem [resolvable:$true] %s207
      %s209 = sshll.u32 %s7, 4
      %s210 = int_to_ptr.hbm [resolvable:$true] %s209
      %212 = dma.vmem_to_hbm [thread:$0]  %s208, 128, %s210, [#allocation4]
    $region49: #{tpu_custom_call.1} parent=1 // pred_fallthru
      _
    // Predicated region
    $region50: #{tpu_custom_call.1} parent=1 // pred_check
      _
    $region51: #{tpu_custom_call.1} parent=1 // pred_check_branch
      %214 = sbr.rel (0) target = $region53
    $region52: #{tpu_custom_call.1} parent=1 // pred_region
      %216 = dma.done [#allocation4], 128
    $region53: #{tpu_custom_call.1} parent=1 // pred_fallthru
      _
    %217 = vsyncpa [#allocation3], 1
    %218 = vsyncpa [#allocation6], 1
    %219 = vsyncpa [#allocation9], 1
    %220 = vsyncpa [#allocation4], 1

// kernel: tpu_custom_call.1
$region0: #{tpu_custom_call.1}
  #allocation0 [shape = 'u32[]', space=smem, size = 0x4, offset = 0x4, fixed_abs, tag = 'smem constant byte address 0x4 - core index']
  #allocation1 [shape = 'u32[72,128]{1,0:T(1,128)}', space=vmem, size = 0x9000, scoped, tag = 'internal scratch']
  %s0 = inlined_call_operand.hbm [shape: f32[8,16], index: 0, kind: input, shape index: {}]
  %s1 = inlined_call_operand.hbm [shape: f32[16,128], index: 1, kind: input, shape index: {}]
  %s2 = inlined_call_operand.vmem [shape: f32[1,128], index: 2, kind: input, shape index: {}]
  %s3 = inlined_call_operand.hbm [shape: f32[128,128], index: 3, kind: input, shape index: {}]
  %s4 = inlined_call_operand.vmem [shape: f32[1,128], index: 4, kind: input, shape index: {}]
  %s5 = inlined_call_operand.hbm [shape: f32[128,128], index: 5, kind: input, shape index: {}]
  %s6 = inlined_call_operand.vmem [shape: f32[1,128], index: 6, kind: input, shape index: {}]
  %s7 = inlined_call_operand.hbm [shape: f32[8,128], index: 7, kind: output, shape index: {}]
  %s8 = sld [smem:[#allocation0]]
  $region54: #{tpu_custom_call.1} parent=0
    _
  %s10 = ssub.s32 1, %s8
  %s11 = scalar_select 0, %s10, %s8
  $region1: #{tpu_custom_call.1} parent=0
    #allocation2 [shape = 'u8[4096]{0}', space=vmem, size = 0x1000, scoped, tag = 'input window, operand 0, single buffered']
    #allocation3 [shape = 's32[1]{0}', space=sflag, size = 0x4, scoped, tag = 'scoped memory for tpu_custom_call.1']
    #allocation4 [shape = 's32[1]{0}', space=sflag, size = 0x4, scoped, tag = 'scoped memory for tpu_custom_call.1']
    #allocation5 [shape = 'u8[8192]{0}', space=vmem, size = 0x2000, scoped, tag = 'input window, operand 1, single buffered']
    #allocation6 [shape = 's32[1]{0}', space=sflag, size = 0x4, scoped, tag = 'scoped memory for tpu_custom_call.1']
    #allocation7 [shape = 'u8[65536]{0}', space=vmem, size = 0x10000, scoped, tag = 'input window, operand 3, single buffered']
    #allocation8 [shape = 'u8[65536]{0}', space=vmem, size = 0x10000, scoped, tag = 'input window, operand 5, single buffered']
    #allocation9 [shape = 's32[1]{0}', space=sflag, size = 0x4, scoped, tag = 'scoped memory for tpu_custom_call.1']
    #allocation10 [shape = 'u8[4096]{0}', space=vmem, size = 0x1000, scoped, tag = 'output window, operand 0, single buffered']
    %12 = vsyncpa [#allocation3], 0
    %13 = vsyncpa [#allocation6], 0
    %14 = vsyncpa [#allocation9], 0
    %15 = vsyncpa [#allocation4], 0
    // Predicated region
    $region2: #{tpu_custom_call.1} parent=1 // pred_check
      _
    $region3: #{tpu_custom_call.1} parent=1 // pred_check_branch
      %17 = sbr.rel (0) target = $region5
    $region4: #{tpu_custom_call.1} parent=1 // pred_region
      %19 = vsyncadd [#allocation3], 0
      %s21 = sshll.u32 %s0, 4
      %s22 = int_to_ptr.hbm [resolvable:$true] %s21
      %s23 = sshll.u32 [#allocation2], 4
      %s24 = int_to_ptr.vmem [resolvable:$true] %s23
      %26 = dma.hbm_to_vmem [thread:$0]  %s22, 128, %s24, [#allocation3]
    $region5: #{tpu_custom_call.1} parent=1 // pred_fallthru
      _
    // Predicated region
    $region6: #{tpu_custom_call.1} parent=1 // pred_check
      _
    $region7: #{tpu_custom_call.1} parent=1 // pred_check_branch
      %28 = sbr.rel (0) target = $region9
    $region8: #{tpu_custom_call.1} parent=1 // pred_region
      %30 = vsyncadd [#allocation6], 0
      %s31 = sshll.u32 %s1, 4
      %s32 = int_to_ptr.hbm [resolvable:$true] %s31
      %s33 = sshll.u32 [#allocation5], 4
      %s34 = int_to_ptr.vmem [resolvable:$true] %s33
      %39 = dma.hbm_to_vmem [thread:$0]  %s32, 256, %s34, [#allocation6], 128, 128, 8
    $region9: #{tpu_custom_call.1} parent=1 // pred_fallthru
      _
    // Predicated region
    $region10: #{tpu_custom_call.1} parent=1 // pred_check
      _
    $region11: #{tpu_custom_call.1} parent=1 // pred_check_branch
      %41 = sbr.rel (0) target = $region13
    $region12: #{tpu_custom_call.1} parent=1 // pred_region
      _
    $region13: #{tpu_custom_call.1} parent=1 // pred_fallthru
      _
    // Predicated region
    $region14: #{tpu_custom_call.1} parent=1 // pred_check
      _
    $region15: #{tpu_custom_call.1} parent=1 // pred_check_branch
      %43 = sbr.rel (0) target = $region17
    $region16: #{tpu_custom_call.1} parent=1 // pred_region
      %45 = vsyncadd [#allocation6], 0
      %s46 = sshll.u32 %s3, 4
      %s47 = int_to_ptr.hbm [resolvable:$true] %s46
      %s48 = sshll.u32 [#allocation7], 4
      %s49 = int_to_ptr.vmem [resolvable:$true] %s48
      %54 = dma.hbm_to_vmem [thread:$0]  %s47, 2048, %s49, [#allocation6], 128, 128, 8
    $region17: #{tpu_custom_call.1} parent=1 // pred_fallthru
      _
    // Predicated region
    $region18: #{tpu_custom_call.1} parent=1 // pred_check
      _
    $region19: #{tpu_custom_call.1} parent=1 // pred_check_branch
      %56 = sbr.rel (0) target = $region21
    $region20: #{tpu_custom_call.1} parent=1 // pred_region
      _
    $region21: #{tpu_custom_call.1} parent=1 // pred_fallthru
      _
    // Predicated region
    $region22: #{tpu_custom_call.1} parent=1 // pred_check
      _
    $region23: #{tpu_custom_call.1} parent=1 // pred_check_branch
      %58 = sbr.rel (0) target = $region25
    $region24: #{tpu_custom_call.1} parent=1 // pred_region
      %60 = vsyncadd [#allocation9], 0
      %s61 = sshll.u32 %s5, 4
      %s62 = int_to_ptr.hbm [resolvable:$true] %s61
      %s63 = sshll.u32 [#allocation8], 4
      %s64 = int_to_ptr.vmem [resolvable:$true] %s63
      %69 = dma.hbm_to_vmem [thread:$0]  %s62, 2048, %s64, [#allocation9], 128, 128, 8
    $region25: #{tpu_custom_call.1} parent=1 // pred_fallthru
      _
    // Predicated region
    $region26: #{tpu_custom_call.1} parent=1 // pred_check
      _
    $region27: #{tpu_custom_call.1} parent=1 // pred_check_branch
      %71 = sbr.rel (0) target = $region29
    $region28: #{tpu_custom_call.1} parent=1 // pred_region
      _
    $region29: #{tpu_custom_call.1} parent=1 // pred_fallthru
      _
    // Predicated region
    $region30: #{tpu_custom_call.1} parent=1 // pred_check
      _
    $region31: #{tpu_custom_call.1} parent=1 // pred_check_branch
      %73 = sbr.rel (0) target = $region33
    $region32: #{tpu_custom_call.1} parent=1 // pred_region
      %75 = dma.done [#allocation3], 128
    $region33: #{tpu_custom_call.1} parent=1 // pred_fallthru
      _
    // Predicated region
    $region34: #{tpu_custom_call.1} parent=1 // pred_check
      _
    $region35: #{tpu_custom_call.1} parent=1 // pred_check_branch
      %77 = sbr.rel (0) target = $region37
    $region36: #{tpu_custom_call.1} parent=1 // pred_region
      %79 = dma.done [#allocation6], 256
    $region37: #{tpu_custom_call.1} parent=1 // pred_fallthru
      _
    // Predicated region
    $region38: #{tpu_custom_call.1} parent=1 // pred_check
      _
    $region39: #{tpu_custom_call.1} parent=1 // pred_check_branch
      %81 = sbr.rel (0) target = $region41
    $region40: #{tpu_custom_call.1} parent=1 // pred_region
      %83 = dma.done [#allocation6], 2048
    $region41: #{tpu_custom_call.1} parent=1 // pred_fallthru
      _
    // Predicated region
    $region42: #{tpu_custom_call.1} parent=1 // pred_check
      _
    $region43: #{tpu_custom_call.1} parent=1 // pred_check_branch
      %85 = sbr.rel (0) target = $region45
    $region44: #{tpu_custom_call.1} parent=1 // pred_region
      %87 = dma.done [#allocation9], 2048
    $region45: #{tpu_custom_call.1} parent=1 // pred_fallthru
      _
    %v88 = vld [vmem:[#allocation2] sm:$0xff]
    %v89 = vld [vmem:[#allocation5] sm:$0xff]
    %v90 = vld [vmem:[#allocation5 + $0x8] sm:$0xff]
    %v91 = vld [vmem:[%s2] sm:$0x1]
    %v93 = vperm.slane %v91, 0
    %vm95 = vcmask 130048
    %v97 = vsel %vm95, %v88, 0
    %99 = vmatpush.msra.mxu0 0.0
    %100 = vmatpush.msra.mxu0 0.0
    %101 = vmatpush.msra.mxu0 0.0
    %102 = vmatpush.msra.mxu0 0.0
    %103 = vmatpush.msra.mxu0 0.0
    %104 = vmatpush.msra.mxu0 0.0
    %105 = vmatpush.msra.mxu0 0.0
    %106 = vmatpush.msra.mxu0 0.0
    %107 = vmatpush.msra.mxu0 0.0
    %108 = vmatpush.msra.mxu0 0.0
    %109 = vmatpush.msra.mxu0 0.0
    %110 = vmatpush.msra.mxu0 0.0
    %111 = vmatpush.msra.mxu0 0.0
    %112 = vmatpush.msra.mxu0 0.0
    %113 = vmatpush.msra.mxu0 %v90
    %114 = vmatpush.msra.mxu0 %v89
    %115 = vmatmul.f32.gmra.mxu0 %v97
    %v116 = vpop.f32.mrf.mxu0
    %v117 = vadd.f32 %v93, %v116
    %118 = vdwg.mxu0
    %v119 = vtanh.pop %v117
    %v120 = vld [vmem:[#allocation7] sm:$0xff]
    %v121 = vld [vmem:[#allocation7 + $0x8] sm:$0xff]
    %v122 = vld [vmem:[#allocation7 + $0x10] sm:$0xff]
    %v123 = vld [vmem:[#allocation7 + $0x18] sm:$0xff]
    %v124 = vld [vmem:[#allocation7 + $0x20] sm:$0xff]
    %v125 = vld [vmem:[#allocation7 + $0x28] sm:$0xff]
    %v126 = vld [vmem:[#allocation7 + $0x30] sm:$0xff]
    %v127 = vld [vmem:[#allocation7 + $0x38] sm:$0xff]
    %v128 = vld [vmem:[#allocation7 + $0x40] sm:$0xff]
    %v129 = vld [vmem:[#allocation7 + $0x48] sm:$0xff]
    %v130 = vld [vmem:[#allocation7 + $0x50] sm:$0xff]
    %v131 = vld [vmem:[#allocation7 + $0x58] sm:$0xff]
    %v132 = vld [vmem:[#allocation7 + $0x60] sm:$0xff]
    %v133 = vld [vmem:[#allocation7 + $0x68] sm:$0xff]
    %v134 = vld [vmem:[#allocation7 + $0x70] sm:$0xff]
    %v135 = vld [vmem:[#allocation7 + $0x78] sm:$0xff]
    %v136 = vld [vmem:[%s4] sm:$0x1]
    %v138 = vperm.slane %v136, 0
    %140 = vmatpush.msra.mxu0 %v135
    %141 = vmatpush.msra.mxu0 %v134
    %142 = vmatpush.msra.mxu0 %v133
    %143 = vmatpush.msra.mxu0 %v132
    %144 = vmatpush.msra.mxu0 %v131
    %145 = vmatpush.msra.mxu0 %v130
    %146 = vmatpush.msra.mxu0 %v129
    %147 = vmatpush.msra.mxu0 %v128
    %148 = vmatpush.msra.mxu0 %v127
    %149 = vmatpush.msra.mxu0 %v126
    %150 = vmatpush.msra.mxu0 %v125
    %151 = vmatpush.msra.mxu0 %v124
    %152 = vmatpush.msra.mxu0 %v123
    %153 = vmatpush.msra.mxu0 %v122
    %154 = vmatpush.msra.mxu0 %v121
    %155 = vmatpush.msra.mxu0 %v120
    %156 = vmatmul.f32.gmra.mxu0 %v119
    %v157 = vpop.f32.mrf.mxu0
    %v158 = vadd.f32 %v138, %v157
    %159 = vdwg.mxu0
    %v160 = vtanh.pop %v158
    %v161 = vld [vmem:[#allocation8] sm:$0xff]
    %v162 = vld [vmem:[#allocation8 + $0x8] sm:$0xff]
    %v163 = vld [vmem:[#allocation8 + $0x10] sm:$0xff]
    %v164 = vld [vmem:[#allocation8 + $0x18] sm:$0xff]
    %v165 = vld [vmem:[#allocation8 + $0x20] sm:$0xff]
    %v166 = vld [vmem:[#allocation8 + $0x28] sm:$0xff]
    %v167 = vld [vmem:[#allocation8 + $0x30] sm:$0xff]
    %v168 = vld [vmem:[#allocation8 + $0x38] sm:$0xff]
    %v169 = vld [vmem:[#allocation8 + $0x40] sm:$0xff]
    %v170 = vld [vmem:[#allocation8 + $0x48] sm:$0xff]
    %v171 = vld [vmem:[#allocation8 + $0x50] sm:$0xff]
    %v172 = vld [vmem:[#allocation8 + $0x58] sm:$0xff]
    %v173 = vld [vmem:[#allocation8 + $0x60] sm:$0xff]
    %v174 = vld [vmem:[#allocation8 + $0x68] sm:$0xff]
    %v175 = vld [vmem:[#allocation8 + $0x70] sm:$0xff]
    %v176 = vld [vmem:[#allocation8 + $0x78] sm:$0xff]
    %v177 = vld [vmem:[%s6] sm:$0x1]
    %v179 = vperm.slane %v177, 0
    %181 = vmatpush.msra.mxu0 %v176
    %182 = vmatpush.msra.mxu0 %v175
    %183 = vmatpush.msra.mxu0 %v174
    %184 = vmatpush.msra.mxu0 %v173
    %185 = vmatpush.msra.mxu0 %v172
    %186 = vmatpush.msra.mxu0 %v171
    %187 = vmatpush.msra.mxu0 %v170
    %188 = vmatpush.msra.mxu0 %v169
    %189 = vmatpush.msra.mxu0 %v168
    %190 = vmatpush.msra.mxu0 %v167
    %191 = vmatpush.msra.mxu0 %v166
    %192 = vmatpush.msra.mxu0 %v165
    %193 = vmatpush.msra.mxu0 %v164
    %194 = vmatpush.msra.mxu0 %v163
    %195 = vmatpush.msra.mxu0 %v162
    %196 = vmatpush.msra.mxu0 %v161
    %197 = vmatmul.f32.gmra.mxu0 %v160
    %v198 = vpop.f32.mrf.mxu0
    %v199 = vadd.f32 %v179, %v198
    %200 = vdwg.mxu0
    %201 = vst [vmem:[#allocation10] sm:$0xff] %v199
    // Predicated region
    $region46: #{tpu_custom_call.1} parent=1 // pred_check
      _
    $region47: #{tpu_custom_call.1} parent=1 // pred_check_branch
      %203 = sbr.rel (0) target = $region49
    $region48: #{tpu_custom_call.1} parent=1 // pred_region
      %205 = vsyncadd [#allocation4], 0
      %s207 = sshll.u32 [#allocation10], 4
      %s208 = int_to_ptr.vmem [resolvable:$true] %s207
      %s209 = sshll.u32 %s7, 4
      %s210 = int_to_ptr.hbm [resolvable:$true] %s209
      %212 = dma.vmem_to_hbm [thread:$0]  %s208, 128, %s210, [#allocation4]
    $region49: #{tpu_custom_call.1} parent=1 // pred_fallthru
      _
    // Predicated region
    $region50: #{tpu_custom_call.1} parent=1 // pred_check
      _
    $region51: #{tpu_custom_call.1} parent=1 // pred_check_branch
      %214 = sbr.rel (0) target = $region53
    $region52: #{tpu_custom_call.1} parent=1 // pred_region
      %216 = dma.done [#allocation4], 128
    $region53: #{tpu_custom_call.1} parent=1 // pred_fallthru
      _
    %217 = vsyncpa [#allocation3], 1
    %218 = vsyncpa [#allocation6], 1
    %219 = vsyncpa [#allocation9], 1
    %220 = vsyncpa [#allocation4], 1

</llo_original>
